<compile_context>
chip_gen: v5e
topology: v5e:2x2
jax: 0.10.0
libtpu: 0.0.40
codegen_flags: <defaults>
</compile_context>

<pallas_src>
import functools

import numpy as np
import jax
import jax.numpy as jnp
from jax import lax
from jax.experimental import pallas as pl
from jax.experimental.pallas import tpu as pltpu


# ---------------------------------------------------------------------------
# Fused CSP kernel
# ---------------------------------------------------------------------------

def _silu(v):
    # sigmoid via EUP exp + approximate EUP reciprocal (keeps the VALU free).
    return v * pl.reciprocal(1.0 + jnp.exp(-v), approx=True)


def _csp_kernel(x_ref, w12_ref, sb12_ref, wm1_ref, sbm1_ref, wm2_ref, sbm2_ref,
                w3a_ref, w3b_ref, sb3_ref, mask_ref, o_ref, *, H, W, shortcut):
    HW = H * W
    c_ = w3a_ref.shape[1]
    n = wm1_ref.shape[0]

    # ---- cv1 & cv2 fused: one (2c_, c1) x (c1, HW) matmul, channel-major ----
    x = x_ref[0].astype(jnp.bfloat16)                       # (c1, HW) lane-dense load
    y12 = jnp.dot(w12_ref[...], x, preferred_element_type=jnp.float32)   # (2c_, HW)
    y12 = _silu(y12 * sb12_ref[:, 0:1] + sb12_ref[:, 1:2])
    b = y12[:c_, :]                                         # bottleneck branch (c_, HW)
    y2 = y12[c_:, :]                                        # cv2 branch       (c_, HW)

    # ---- 3x3 conv from shifted lane views (no im2col scratch / relayout) ----
    def conv3x3(v, w_r, sb):
        # v: (c_, HW) f32, w_r: (c_, 9c_) bf16, sb: (c_, 2) f32 -> (c_, HW) f32
        parts = []
        idx = 0
        for dh in (-1, 0, 1):
            for dw in (-1, 0, 1):
                off = dh * W + dw
                if off == 0:
                    parts.append(v)                         # center: mask is all-ones
                else:
                    s = pltpu.roll(v, shift=(-off) % HW, axis=1)   # XLU lane rotate
                    parts.append(s * mask_ref[idx:idx + 1, :])     # zero invalid borders
                idx += 1
        # concat in f32 (each piece is a full 8-row sublane tile -> aligned),
        # then a single cast + single K = 9c_ MXU contraction.
        pat = jnp.concatenate(parts, axis=0).astype(jnp.bfloat16)  # (9c_, HW)
        y = jnp.dot(w_r, pat, preferred_element_type=jnp.float32)  # (c_, HW)
        return _silu(y * sb[:, 0:1] + sb[:, 1:2])

    def bottleneck(i, bb):
        t = conv3x3(bb, wm1_ref[i], sbm1_ref[i])
        u = conv3x3(t, wm2_ref[i], sbm2_ref[i])
        return bb + u if shortcut else u

    if n <= 2:                                              # small n: static unroll
        for i in range(n):
            b = bottleneck(i, b)
    else:                                                   # realistic n: tight live ranges
        b = lax.fori_loop(0, n, bottleneck, b)

    # ---- cv3 on the split halves (no HBM / in-kernel concat) ----------------
    out = (jnp.dot(w3a_ref[...], b.astype(jnp.bfloat16),
                   preferred_element_type=jnp.float32) +
           jnp.dot(w3b_ref[...], y2.astype(jnp.bfloat16),
                   preferred_element_type=jnp.float32))     # (c2, HW)
    out = _silu(out * sb3_ref[:, 0:1] + sb3_ref[:, 1:2])
    o_ref[0] = out.astype(o_ref.dtype)                      # lane-dense store, no transpose


def csp_forward(x_nchw, params, shortcut=True):
    """x_nchw: (N, c1, H, W) -> (N, c2, H, W), single fused pallas_call."""
    N, c1, H, W = x_nchw.shape
    HW = H * W

    p1, p2, p3 = params["cv1"], params["cv2"], params["cv3"]
    c_ = p1["w"].shape[3]
    c2 = p3["w"].shape[3]
    n = len(params["m"])
    assert n >= 1, "fused CSP kernel expects at least one Bottleneck"

    bf16 = jnp.bfloat16

    # cv1 | cv2 fused along Cout, transposed for channel-major (W^T @ x) compute.
    w12 = jnp.concatenate([p1["w"][0, 0], p2["w"][0, 0]], axis=1).T.astype(bf16)   # (2c_, c1)

    def _sb(scale, bias):        # -> (C, 2): col0 = scale, col1 = bias
        return jnp.concatenate([scale, bias], axis=0).T

    sb12 = _sb(jnp.concatenate([p1["scale"], p2["scale"]], axis=1),
               jnp.concatenate([p1["bias"], p2["bias"]], axis=1))                   # (2c_, 2)

    def _w3x3(w):                # HWIO (3,3,ci,co) -> (co, 9*ci), rows = (kh,kw,ci)
        return jnp.transpose(w, (3, 0, 1, 2)).reshape(w.shape[3], -1).astype(bf16)

    wm1 = jnp.stack([_w3x3(bp["cv1"]["w"]) for bp in params["m"]])                  # (n, c_, 9c_)
    wm2 = jnp.stack([_w3x3(bp["cv2"]["w"]) for bp in params["m"]])
    sbm1 = jnp.stack([_sb(bp["cv1"]["scale"], bp["cv1"]["bias"]) for bp in params["m"]])  # (n, c_, 2)
    sbm2 = jnp.stack([_sb(bp["cv2"]["scale"], bp["cv2"]["bias"]) for bp in params["m"]])

    # cv3 split along its input channels (matches torch.cat([m(cv1), cv2], 1)).
    w3 = p3["w"][0, 0]                                                              # (2c_, c2)
    w3a = w3[:c_].T.astype(bf16)                                                    # (c2, c_)
    w3b = w3[c_:].T.astype(bf16)
    sb3 = _sb(p3["scale"], p3["bias"])                                              # (c2, 2)

    # Border-validity masks for the 9 shifted views (0/1, precomputed once).
    hh, ww = np.meshgrid(np.arange(H), np.arange(W), indexing="ij")
    rows = []
    for dh in (-1, 0, 1):
        for dw in (-1, 0, 1):
            valid = ((hh + dh >= 0) & (hh + dh < H) &
                     (ww + dw >= 0) & (ww + dw < W))
            rows.append(valid.reshape(-1))
    mask = jnp.asarray(np.stack(rows).astype(np.float32))                           # (9, HW)

    x_flat = x_nchw.reshape(N, c1, HW)       # free reshape; channel-major, lane-dense in HBM

    kernel = functools.partial(_csp_kernel, H=H, W=W, shortcut=shortcut)
    out = pl.pallas_call(
        kernel,
        out_shape=jax.ShapeDtypeStruct((N, c2, HW), x_nchw.dtype),
        grid=(N,),
        in_specs=[
            pl.BlockSpec((1, c1, HW), lambda i: (i, 0, 0)),
            pl.BlockSpec((2 * c_, c1), lambda i: (0, 0)),
            pl.BlockSpec((2 * c_, 2), lambda i: (0, 0)),
            pl.BlockSpec((n, c_, 9 * c_), lambda i: (0, 0, 0)),
            pl.BlockSpec((n, c_, 2), lambda i: (0, 0, 0)),
            pl.BlockSpec((n, c_, 9 * c_), lambda i: (0, 0, 0)),
            pl.BlockSpec((n, c_, 2), lambda i: (0, 0, 0)),
            pl.BlockSpec((c2, c_), lambda i: (0, 0)),
            pl.BlockSpec((c2, c_), lambda i: (0, 0)),
            pl.BlockSpec((c2, 2), lambda i: (0, 0)),
            pl.BlockSpec((9, HW), lambda i: (0, 0)),
        ],
        out_specs=pl.BlockSpec((1, c2, HW), lambda i: (i, 0, 0)),
        compiler_params=pltpu.CompilerParams(dimension_semantics=("parallel",)),
    )(x_flat, w12, sb12, wm1, sbm1, wm2, sbm2, w3a, w3b, sb3, mask)

    return out.reshape(N, c2, H, W)


# ---------------------------------------------------------------------------
# Parameter construction (deterministic, eval-mode BN folded to scale/bias)
# ---------------------------------------------------------------------------

def _fold_bn(gamma, beta, mean, var, eps=1e-5):
    scale = gamma / jnp.sqrt(var + eps)
    bias = beta - mean * scale
    return scale[None, :], bias[None, :]                  # (1, Cout) each


def _make_conv_params(key, cin, cout, k):
    kw, kg, kb, km, kv = jax.random.split(key, 5)
    fan_in = cin * k * k
    w = jax.random.normal(kw, (k, k, cin, cout), jnp.float32) / jnp.sqrt(fan_in)
    gamma = jax.random.uniform(kg, (cout,), jnp.float32, 0.5, 1.5)
    beta = 0.1 * jax.random.normal(kb, (cout,), jnp.float32)
    mean = 0.1 * jax.random.normal(km, (cout,), jnp.float32)
    var = jax.random.uniform(kv, (cout,), jnp.float32, 0.5, 1.5)
    scale, bias = _fold_bn(gamma, beta, mean, var)
    return {"w": w, "scale": scale, "bias": bias}


def make_csp_params(key, c1, c2, n=1, e=0.5):
    c_ = int(c2 * e)
    keys = jax.random.split(key, 3 + 2 * n)
    params = {
        "cv1": _make_conv_params(keys[0], c1, c_, 1),
        "cv2": _make_conv_params(keys[1], c1, c_, 1),
        "cv3": _make_conv_params(keys[2], 2 * c_, c2, 1),
        "m": [],
    }
    for i in range(n):                                    # Bottleneck(c_, c_, e=1.0)
        params["m"].append({
            "cv1": _make_conv_params(keys[3 + 2 * i], c_, c_, 3),
            "cv2": _make_conv_params(keys[4 + 2 * i], c_, c_, 3),
        })
    return params


# ---------------------------------------------------------------------------
# Pure-JAX reference (lax.conv) for a sanity check
# ---------------------------------------------------------------------------

def _ref_conv_bn_silu(x_nhwc, p, padding):
    y = lax.conv_general_dilated(
        x_nhwc, p["w"], (1, 1), padding,
        dimension_numbers=("NHWC", "HWIO", "NHWC"))
    y = y * p["scale"][0] + p["bias"][0]
    return y * jax.nn.sigmoid(y)


def csp_reference(x_nchw, params, shortcut=True):
    x = jnp.transpose(x_nchw, (0, 2, 3, 1))
    y1 = _ref_conv_bn_silu(x, params["cv1"], "VALID")
    y2 = _ref_conv_bn_silu(x, params["cv2"], "VALID")
    b = y1
    for bp in params["m"]:
        t = _ref_conv_bn_silu(b, bp["cv1"], "SAME")
        u = _ref_conv_bn_silu(t, bp["cv2"], "SAME")
        b = b + u if shortcut else u
    cat = jnp.concatenate([b, y2], axis=-1)
    out = _ref_conv_bn_silu(cat, params["cv3"], "VALID")
    return jnp.transpose(out, (0, 3, 1, 2))


# ---------------------------------------------------------------------------

if __name__ == "__main__":
    key = jax.random.PRNGKey(0)
    k_x, k_p = jax.random.split(key)

    # CSP(c1=16, c2=16, n=1, shortcut=True, e=0.5) on a (2, 16, 16, 16) NCHW input
    c1, c2, n = 16, 16, 1
    x = jax.random.normal(k_x, (2, c1, 16, 16), jnp.float32)
    params = make_csp_params(k_p, c1, c2, n=n, e=0.5)

    out = jax.block_until_ready(csp_forward(x, params))
    ref = jax.block_until_ready(csp_reference(x, params))

    assert out.shape == (2, c2, 16, 16)
    err = jnp.max(jnp.abs(out - ref))
    assert jnp.allclose(out, ref, rtol=3e-2, atol=3e-2), f"max abs diff {err}"

    print("KERNEL_OK")
</pallas_src>

<mosaic_0001>
module attributes {stable_mosaic.version = 11 : i64} {
  func.func @_csp_kernel(%arg0: i32, %arg1: memref<1x16x256xf32, #tpu.memory_space<vmem>>, %arg2: memref<16x16xbf16, #tpu.memory_space<vmem>>, %arg3: memref<16x2xf32, #tpu.memory_space<vmem>>, %arg4: memref<1x8x72xbf16, #tpu.memory_space<vmem>>, %arg5: memref<1x8x2xf32, #tpu.memory_space<vmem>>, %arg6: memref<1x8x72xbf16, #tpu.memory_space<vmem>>, %arg7: memref<1x8x2xf32, #tpu.memory_space<vmem>>, %arg8: memref<16x8xbf16, #tpu.memory_space<vmem>>, %arg9: memref<16x8xbf16, #tpu.memory_space<vmem>>, %arg10: memref<16x2xf32, #tpu.memory_space<vmem>>, %arg11: memref<9x256xf32, #tpu.memory_space<vmem>>, %arg12: memref<1x16x256xf32, #tpu.memory_space<vmem>>) attributes {dimension_semantics = [#tpu.dimension_semantics<parallel>], iteration_bounds = array<i64: 2>, scalar_prefetch = 0 : i64, scratch_operands = 0 : i64, tpu.core_type = #tpu.core_type<tc>, window_params = [{transform_indices = @transform_0, window_bounds = array<i64: 1, 16, 256>}, {pipeline_mode = #tpu.pipeline_mode<synchronous>, transform_indices = @transform_1, window_bounds = array<i64: 16, 16>}, {pipeline_mode = #tpu.pipeline_mode<synchronous>, transform_indices = @transform_2, window_bounds = array<i64: 16, 2>}, {pipeline_mode = #tpu.pipeline_mode<synchronous>, transform_indices = @transform_3, window_bounds = array<i64: 1, 8, 72>}, {pipeline_mode = #tpu.pipeline_mode<synchronous>, transform_indices = @transform_4, window_bounds = array<i64: 1, 8, 2>}, {pipeline_mode = #tpu.pipeline_mode<synchronous>, transform_indices = @transform_5, window_bounds = array<i64: 1, 8, 72>}, {pipeline_mode = #tpu.pipeline_mode<synchronous>, transform_indices = @transform_6, window_bounds = array<i64: 1, 8, 2>}, {pipeline_mode = #tpu.pipeline_mode<synchronous>, transform_indices = @transform_7, window_bounds = array<i64: 16, 8>}, {pipeline_mode = #tpu.pipeline_mode<synchronous>, transform_indices = @transform_8, window_bounds = array<i64: 16, 8>}, {pipeline_mode = #tpu.pipeline_mode<synchronous>, transform_indices = @transform_9, window_bounds = array<i64: 16, 2>}, {pipeline_mode = #tpu.pipeline_mode<synchronous>, transform_indices = @transform_10, window_bounds = array<i64: 9, 256>}, {transform_indices = @transform_11, window_bounds = array<i64: 1, 16, 256>}]} {
    %c0 = arith.constant 0 : index
    %c0_0 = arith.constant 0 : index
    %c0_1 = arith.constant 0 : index
    %0 = vector.load %arg1[%c0, %c0_0, %c0_1] : memref<1x16x256xf32, #tpu.memory_space<vmem>>, vector<1x16x256xf32>
    %1 = vector.shape_cast %0 : vector<1x16x256xf32> to vector<16x256xf32>
    %2 = arith.truncf %1 : vector<16x256xf32> to vector<16x256xbf16>
    %c0_2 = arith.constant 0 : index
    %c0_3 = arith.constant 0 : index
    %3 = vector.load %arg2[%c0_2, %c0_3] : memref<16x16xbf16, #tpu.memory_space<vmem>>, vector<16x16xbf16>
    %cst = arith.constant dense<0.000000e+00> : vector<16x256xf32>
    %4 = tpu.matmul %3, %2, %cst {dimension_numbers = #tpu.dot_dimension_numbers<[1], [0], [0], [1], [0, 0, 1, 1], [], []>} : vector<16x16xbf16>, vector<16x256xbf16>, vector<16x256xf32> -> vector<16x256xf32>
    %c0_4 = arith.constant 0 : index
    %c0_5 = arith.constant 0 : index
    %5 = vector.load %arg3[%c0_4, %c0_5] : memref<16x2xf32, #tpu.memory_space<vmem>>, vector<16x1xf32>
    %6 = vector.broadcast %5 : vector<16x1xf32> to vector<16x256xf32>
    %7 = arith.mulf %4, %6 : vector<16x256xf32>
    %c0_6 = arith.constant 0 : index
    %c1 = arith.constant 1 : index
    %8 = vector.load %arg3[%c0_6, %c1] : memref<16x2xf32, #tpu.memory_space<vmem>>, vector<16x1xf32>
    %9 = vector.broadcast %8 : vector<16x1xf32> to vector<16x256xf32>
    %10 = arith.addf %7, %9 : vector<16x256xf32>
    %cst_7 = arith.constant 0.000000e+00 : f32
    %11 = vector.broadcast %cst_7 : f32 to vector<16x256xf32>
    %12 = arith.subf %11, %10 : vector<16x256xf32>
    %13 = math.exp %12 : vector<16x256xf32>
    %cst_8 = arith.constant 1.000000e+00 : f32
    %14 = vector.broadcast %cst_8 : f32 to vector<16x256xf32>
    %15 = arith.addf %14, %13 : vector<16x256xf32>
    %16 = tpu.reciprocal %15 {approx = true} : vector<16x256xf32> -> vector<16x256xf32>
    %17 = arith.mulf %10, %16 : vector<16x256xf32>
    %18 = vector.extract_strided_slice %17 {offsets = [0, 0], sizes = [8, 256], strides = [1, 1]} : vector<16x256xf32> to vector<8x256xf32>
    %19 = vector.extract_strided_slice %17 {offsets = [8, 0], sizes = [8, 256], strides = [1, 1]} : vector<16x256xf32> to vector<8x256xf32>
    %c0_9 = arith.constant 0 : index
    %c0_10 = arith.constant 0 : index
    %c0_11 = arith.constant 0 : index
    %20 = vector.load %arg4[%c0_9, %c0_10, %c0_11] : memref<1x8x72xbf16, #tpu.memory_space<vmem>>, vector<1x8x72xbf16>
    %21 = vector.shape_cast %20 : vector<1x8x72xbf16> to vector<8x72xbf16>
    %c0_12 = arith.constant 0 : index
    %c0_13 = arith.constant 0 : index
    %c0_14 = arith.constant 0 : index
    %22 = vector.load %arg5[%c0_12, %c0_13, %c0_14] : memref<1x8x2xf32, #tpu.memory_space<vmem>>, vector<1x8x2xf32>
    %23 = vector.shape_cast %22 : vector<1x8x2xf32> to vector<8x2xf32>
    %c17_i32 = arith.constant 17 : i32
    %24 = tpu.dynamic_rotate %18 by %c17_i32 dim 1 : vector<8x256xf32>, i32 -> vector<8x256xf32>
    %c0_15 = arith.constant 0 : index
    %c0_16 = arith.constant 0 : index
    %25 = vector.load %arg11[%c0_15, %c0_16] : memref<9x256xf32, #tpu.memory_space<vmem>>, vector<1x256xf32>
    %26 = vector.broadcast %25 : vector<1x256xf32> to vector<8x256xf32>
    %27 = arith.mulf %24, %26 : vector<8x256xf32>
    %c16_i32 = arith.constant 16 : i32
    %28 = tpu.dynamic_rotate %18 by %c16_i32 dim 1 : vector<8x256xf32>, i32 -> vector<8x256xf32>
    %c1_17 = arith.constant 1 : index
    %c0_18 = arith.constant 0 : index
    %29 = vector.load %arg11[%c1_17, %c0_18] : memref<9x256xf32, #tpu.memory_space<vmem>>, vector<1x256xf32>
    %30 = vector.broadcast %29 : vector<1x256xf32> to vector<8x256xf32>
    %31 = arith.mulf %28, %30 : vector<8x256xf32>
    %c15_i32 = arith.constant 15 : i32
    %32 = tpu.dynamic_rotate %18 by %c15_i32 dim 1 : vector<8x256xf32>, i32 -> vector<8x256xf32>
    %c2 = arith.constant 2 : index
    %c0_19 = arith.constant 0 : index
    %33 = vector.load %arg11[%c2, %c0_19] : memref<9x256xf32, #tpu.memory_space<vmem>>, vector<1x256xf32>
    %34 = vector.broadcast %33 : vector<1x256xf32> to vector<8x256xf32>
    %35 = arith.mulf %32, %34 : vector<8x256xf32>
    %c1_i32 = arith.constant 1 : i32
    %36 = tpu.dynamic_rotate %18 by %c1_i32 dim 1 : vector<8x256xf32>, i32 -> vector<8x256xf32>
    %c3 = arith.constant 3 : index
    %c0_20 = arith.constant 0 : index
    %37 = vector.load %arg11[%c3, %c0_20] : memref<9x256xf32, #tpu.memory_space<vmem>>, vector<1x256xf32>
    %38 = vector.broadcast %37 : vector<1x256xf32> to vector<8x256xf32>
    %39 = arith.mulf %36, %38 : vector<8x256xf32>
    %c255_i32 = arith.constant 255 : i32
    %40 = tpu.dynamic_rotate %18 by %c255_i32 dim 1 : vector<8x256xf32>, i32 -> vector<8x256xf32>
    %c5 = arith.constant 5 : index
    %c0_21 = arith.constant 0 : index
    %41 = vector.load %arg11[%c5, %c0_21] : memref<9x256xf32, #tpu.memory_space<vmem>>, vector<1x256xf32>
    %42 = vector.broadcast %41 : vector<1x256xf32> to vector<8x256xf32>
    %43 = arith.mulf %40, %42 : vector<8x256xf32>
    %c241_i32 = arith.constant 241 : i32
    %44 = tpu.dynamic_rotate %18 by %c241_i32 dim 1 : vector<8x256xf32>, i32 -> vector<8x256xf32>
    %c6 = arith.constant 6 : index
    %c0_22 = arith.constant 0 : index
    %45 = vector.load %arg11[%c6, %c0_22] : memref<9x256xf32, #tpu.memory_space<vmem>>, vector<1x256xf32>
    %46 = vector.broadcast %45 : vector<1x256xf32> to vector<8x256xf32>
    %47 = arith.mulf %44, %46 : vector<8x256xf32>
    %c240_i32 = arith.constant 240 : i32
    %48 = tpu.dynamic_rotate %18 by %c240_i32 dim 1 : vector<8x256xf32>, i32 -> vector<8x256xf32>
    %c7 = arith.constant 7 : index
    %c0_23 = arith.constant 0 : index
    %49 = vector.load %arg11[%c7, %c0_23] : memref<9x256xf32, #tpu.memory_space<vmem>>, vector<1x256xf32>
    %50 = vector.broadcast %49 : vector<1x256xf32> to vector<8x256xf32>
    %51 = arith.mulf %48, %50 : vector<8x256xf32>
    %c239_i32 = arith.constant 239 : i32
    %52 = tpu.dynamic_rotate %18 by %c239_i32 dim 1 : vector<8x256xf32>, i32 -> vector<8x256xf32>
    %c8 = arith.constant 8 : index
    %c0_24 = arith.constant 0 : index
    %53 = vector.load %arg11[%c8, %c0_24] : memref<9x256xf32, #tpu.memory_space<vmem>>, vector<1x256xf32>
    %54 = vector.broadcast %53 : vector<1x256xf32> to vector<8x256xf32>
    %55 = arith.mulf %52, %54 : vector<8x256xf32>
    %56 = tpu.concatenate %27, %31, %35, %39, %18, %43, %47, %51, %55 in 0 : vector<8x256xf32>, vector<8x256xf32>, vector<8x256xf32>, vector<8x256xf32>, vector<8x256xf32>, vector<8x256xf32>, vector<8x256xf32>, vector<8x256xf32>, vector<8x256xf32> -> vector<72x256xf32>
    %57 = arith.truncf %56 : vector<72x256xf32> to vector<72x256xbf16>
    %cst_25 = arith.constant dense<0.000000e+00> : vector<8x256xf32>
    %58 = tpu.matmul %21, %57, %cst_25 {dimension_numbers = #tpu.dot_dimension_numbers<[1], [0], [0], [1], [0, 0, 1, 1], [], []>} : vector<8x72xbf16>, vector<72x256xbf16>, vector<8x256xf32> -> vector<8x256xf32>
    %59 = vector.extract_strided_slice %23 {offsets = [0, 0], sizes = [8, 1], strides = [1, 1]} : vector<8x2xf32> to vector<8x1xf32>
    %60 = vector.broadcast %59 : vector<8x1xf32> to vector<8x256xf32>
    %61 = arith.mulf %58, %60 : vector<8x256xf32>
    %62 = vector.extract_strided_slice %23 {offsets = [0, 1], sizes = [8, 1], strides = [1, 1]} : vector<8x2xf32> to vector<8x1xf32>
    %63 = vector.broadcast %62 : vector<8x1xf32> to vector<8x256xf32>
    %64 = arith.addf %61, %63 : vector<8x256xf32>
    %cst_26 = arith.constant 0.000000e+00 : f32
    %65 = vector.broadcast %cst_26 : f32 to vector<8x256xf32>
    %66 = arith.subf %65, %64 : vector<8x256xf32>
    %67 = math.exp %66 : vector<8x256xf32>
    %cst_27 = arith.constant 1.000000e+00 : f32
    %68 = vector.broadcast %cst_27 : f32 to vector<8x256xf32>
    %69 = arith.addf %68, %67 : vector<8x256xf32>
    %70 = tpu.reciprocal %69 {approx = true} : vector<8x256xf32> -> vector<8x256xf32>
    %71 = arith.mulf %64, %70 : vector<8x256xf32>
    %c0_28 = arith.constant 0 : index
    %c0_29 = arith.constant 0 : index
    %c0_30 = arith.constant 0 : index
    %72 = vector.load %arg6[%c0_28, %c0_29, %c0_30] : memref<1x8x72xbf16, #tpu.memory_space<vmem>>, vector<1x8x72xbf16>
    %73 = vector.shape_cast %72 : vector<1x8x72xbf16> to vector<8x72xbf16>
    %c0_31 = arith.constant 0 : index
    %c0_32 = arith.constant 0 : index
    %c0_33 = arith.constant 0 : index
    %74 = vector.load %arg7[%c0_31, %c0_32, %c0_33] : memref<1x8x2xf32, #tpu.memory_space<vmem>>, vector<1x8x2xf32>
    %75 = vector.shape_cast %74 : vector<1x8x2xf32> to vector<8x2xf32>
    %c17_i32_34 = arith.constant 17 : i32
    %76 = tpu.dynamic_rotate %71 by %c17_i32_34 dim 1 : vector<8x256xf32>, i32 -> vector<8x256xf32>
    %c0_35 = arith.constant 0 : index
    %c0_36 = arith.constant 0 : index
    %77 = vector.load %arg11[%c0_35, %c0_36] : memref<9x256xf32, #tpu.memory_space<vmem>>, vector<1x256xf32>
    %78 = vector.broadcast %77 : vector<1x256xf32> to vector<8x256xf32>
    %79 = arith.mulf %76, %78 : vector<8x256xf32>
    %c16_i32_37 = arith.constant 16 : i32
    %80 = tpu.dynamic_rotate %71 by %c16_i32_37 dim 1 : vector<8x256xf32>, i32 -> vector<8x256xf32>
    %c1_38 = arith.constant 1 : index
    %c0_39 = arith.constant 0 : index
    %81 = vector.load %arg11[%c1_38, %c0_39] : memref<9x256xf32, #tpu.memory_space<vmem>>, vector<1x256xf32>
    %82 = vector.broadcast %81 : vector<1x256xf32> to vector<8x256xf32>
    %83 = arith.mulf %80, %82 : vector<8x256xf32>
    %c15_i32_40 = arith.constant 15 : i32
    %84 = tpu.dynamic_rotate %71 by %c15_i32_40 dim 1 : vector<8x256xf32>, i32 -> vector<8x256xf32>
    %c2_41 = arith.constant 2 : index
    %c0_42 = arith.constant 0 : index
    %85 = vector.load %arg11[%c2_41, %c0_42] : memref<9x256xf32, #tpu.memory_space<vmem>>, vector<1x256xf32>
    %86 = vector.broadcast %85 : vector<1x256xf32> to vector<8x256xf32>
    %87 = arith.mulf %84, %86 : vector<8x256xf32>
    %c1_i32_43 = arith.constant 1 : i32
    %88 = tpu.dynamic_rotate %71 by %c1_i32_43 dim 1 : vector<8x256xf32>, i32 -> vector<8x256xf32>
    %c3_44 = arith.constant 3 : index
    %c0_45 = arith.constant 0 : index
    %89 = vector.load %arg11[%c3_44, %c0_45] : memref<9x256xf32, #tpu.memory_space<vmem>>, vector<1x256xf32>
    %90 = vector.broadcast %89 : vector<1x256xf32> to vector<8x256xf32>
    %91 = arith.mulf %88, %90 : vector<8x256xf32>
    %c255_i32_46 = arith.constant 255 : i32
    %92 = tpu.dynamic_rotate %71 by %c255_i32_46 dim 1 : vector<8x256xf32>, i32 -> vector<8x256xf32>
    %c5_47 = arith.constant 5 : index
    %c0_48 = arith.constant 0 : index
    %93 = vector.load %arg11[%c5_47, %c0_48] : memref<9x256xf32, #tpu.memory_space<vmem>>, vector<1x256xf32>
    %94 = vector.broadcast %93 : vector<1x256xf32> to vector<8x256xf32>
    %95 = arith.mulf %92, %94 : vector<8x256xf32>
    %c241_i32_49 = arith.constant 241 : i32
    %96 = tpu.dynamic_rotate %71 by %c241_i32_49 dim 1 : vector<8x256xf32>, i32 -> vector<8x256xf32>
    %c6_50 = arith.constant 6 : index
    %c0_51 = arith.constant 0 : index
    %97 = vector.load %arg11[%c6_50, %c0_51] : memref<9x256xf32, #tpu.memory_space<vmem>>, vector<1x256xf32>
    %98 = vector.broadcast %97 : vector<1x256xf32> to vector<8x256xf32>
    %99 = arith.mulf %96, %98 : vector<8x256xf32>
    %c240_i32_52 = arith.constant 240 : i32
    %100 = tpu.dynamic_rotate %71 by %c240_i32_52 dim 1 : vector<8x256xf32>, i32 -> vector<8x256xf32>
    %c7_53 = arith.constant 7 : index
    %c0_54 = arith.constant 0 : index
    %101 = vector.load %arg11[%c7_53, %c0_54] : memref<9x256xf32, #tpu.memory_space<vmem>>, vector<1x256xf32>
    %102 = vector.broadcast %101 : vector<1x256xf32> to vector<8x256xf32>
    %103 = arith.mulf %100, %102 : vector<8x256xf32>
    %c239_i32_55 = arith.constant 239 : i32
    %104 = tpu.dynamic_rotate %71 by %c239_i32_55 dim 1 : vector<8x256xf32>, i32 -> vector<8x256xf32>
    %c8_56 = arith.constant 8 : index
    %c0_57 = arith.constant 0 : index
    %105 = vector.load %arg11[%c8_56, %c0_57] : memref<9x256xf32, #tpu.memory_space<vmem>>, vector<1x256xf32>
    %106 = vector.broadcast %105 : vector<1x256xf32> to vector<8x256xf32>
    %107 = arith.mulf %104, %106 : vector<8x256xf32>
    %108 = tpu.concatenate %79, %83, %87, %91, %71, %95, %99, %103, %107 in 0 : vector<8x256xf32>, vector<8x256xf32>, vector<8x256xf32>, vector<8x256xf32>, vector<8x256xf32>, vector<8x256xf32>, vector<8x256xf32>, vector<8x256xf32>, vector<8x256xf32> -> vector<72x256xf32>
    %109 = arith.truncf %108 : vector<72x256xf32> to vector<72x256xbf16>
    %cst_58 = arith.constant dense<0.000000e+00> : vector<8x256xf32>
    %110 = tpu.matmul %73, %109, %cst_58 {dimension_numbers = #tpu.dot_dimension_numbers<[1], [0], [0], [1], [0, 0, 1, 1], [], []>} : vector<8x72xbf16>, vector<72x256xbf16>, vector<8x256xf32> -> vector<8x256xf32>
    %111 = vector.extract_strided_slice %75 {offsets = [0, 0], sizes = [8, 1], strides = [1, 1]} : vector<8x2xf32> to vector<8x1xf32>
    %112 = vector.broadcast %111 : vector<8x1xf32> to vector<8x256xf32>
    %113 = arith.mulf %110, %112 : vector<8x256xf32>
    %114 = vector.extract_strided_slice %75 {offsets = [0, 1], sizes = [8, 1], strides = [1, 1]} : vector<8x2xf32> to vector<8x1xf32>
    %115 = vector.broadcast %114 : vector<8x1xf32> to vector<8x256xf32>
    %116 = arith.addf %113, %115 : vector<8x256xf32>
    %cst_59 = arith.constant 0.000000e+00 : f32
    %117 = vector.broadcast %cst_59 : f32 to vector<8x256xf32>
    %118 = arith.subf %117, %116 : vector<8x256xf32>
    %119 = math.exp %118 : vector<8x256xf32>
    %cst_60 = arith.constant 1.000000e+00 : f32
    %120 = vector.broadcast %cst_60 : f32 to vector<8x256xf32>
    %121 = arith.addf %120, %119 : vector<8x256xf32>
    %122 = tpu.reciprocal %121 {approx = true} : vector<8x256xf32> -> vector<8x256xf32>
    %123 = arith.mulf %116, %122 : vector<8x256xf32>
    %124 = arith.addf %18, %123 : vector<8x256xf32>
    %c0_61 = arith.constant 0 : index
    %c0_62 = arith.constant 0 : index
    %125 = vector.load %arg8[%c0_61, %c0_62] : memref<16x8xbf16, #tpu.memory_space<vmem>>, vector<16x8xbf16>
    %126 = arith.truncf %124 : vector<8x256xf32> to vector<8x256xbf16>
    %cst_63 = arith.constant dense<0.000000e+00> : vector<16x256xf32>
    %127 = tpu.matmul %125, %126, %cst_63 {dimension_numbers = #tpu.dot_dimension_numbers<[1], [0], [0], [1], [0, 0, 1, 1], [], []>} : vector<16x8xbf16>, vector<8x256xbf16>, vector<16x256xf32> -> vector<16x256xf32>
    %c0_64 = arith.constant 0 : index
    %c0_65 = arith.constant 0 : index
    %128 = vector.load %arg9[%c0_64, %c0_65] : memref<16x8xbf16, #tpu.memory_space<vmem>>, vector<16x8xbf16>
    %129 = arith.truncf %19 : vector<8x256xf32> to vector<8x256xbf16>
    %cst_66 = arith.constant dense<0.000000e+00> : vector<16x256xf32>
    %130 = tpu.matmul %128, %129, %cst_66 {dimension_numbers = #tpu.dot_dimension_numbers<[1], [0], [0], [1], [0, 0, 1, 1], [], []>} : vector<16x8xbf16>, vector<8x256xbf16>, vector<16x256xf32> -> vector<16x256xf32>
    %131 = arith.addf %127, %130 : vector<16x256xf32>
    %c0_67 = arith.constant 0 : index
    %c0_68 = arith.constant 0 : index
    %132 = vector.load %arg10[%c0_67, %c0_68] : memref<16x2xf32, #tpu.memory_space<vmem>>, vector<16x1xf32>
    %133 = vector.broadcast %132 : vector<16x1xf32> to vector<16x256xf32>
    %134 = arith.mulf %131, %133 : vector<16x256xf32>
    %c0_69 = arith.constant 0 : index
    %c1_70 = arith.constant 1 : index
    %135 = vector.load %arg10[%c0_69, %c1_70] : memref<16x2xf32, #tpu.memory_space<vmem>>, vector<16x1xf32>
    %136 = vector.broadcast %135 : vector<16x1xf32> to vector<16x256xf32>
    %137 = arith.addf %134, %136 : vector<16x256xf32>
    %cst_71 = arith.constant 0.000000e+00 : f32
    %138 = vector.broadcast %cst_71 : f32 to vector<16x256xf32>
    %139 = arith.subf %138, %137 : vector<16x256xf32>
    %140 = math.exp %139 : vector<16x256xf32>
    %cst_72 = arith.constant 1.000000e+00 : f32
    %141 = vector.broadcast %cst_72 : f32 to vector<16x256xf32>
    %142 = arith.addf %141, %140 : vector<16x256xf32>
    %143 = tpu.reciprocal %142 {approx = true} : vector<16x256xf32> -> vector<16x256xf32>
    %144 = arith.mulf %137, %143 : vector<16x256xf32>
    %c0_73 = arith.constant 0 : index
    %c0_74 = arith.constant 0 : index
    %c0_75 = arith.constant 0 : index
    %145 = vector.load %arg12[%c0_73, %c0_74, %c0_75] : memref<1x16x256xf32, #tpu.memory_space<vmem>>, vector<1x16x256xf32>
    %146 = vector.shape_cast %145 : vector<1x16x256xf32> to vector<16x256xf32>
    %147 = vector.shape_cast %144 : vector<16x256xf32> to vector<1x16x256xf32>
    tpu.vector_store %arg12[%c0_73, %c0_74, %c0_75], %147 {strides = array<i32>} : memref<1x16x256xf32, #tpu.memory_space<vmem>>, vector<1x16x256xf32>,
    return
  }
  func.func @transform_0(%arg0: i32) -> (i32, i32, i32) {
    %c0_i32 = arith.constant 0 : i32
    %c0_i32_0 = arith.constant 0 : i32
    %c0_i32_1 = arith.constant 0 : i32
    return %arg0, %c0_i32, %c0_i32_0 : i32, i32, i32
  }
  func.func @transform_1(%arg0: i32) -> (i32, i32) {
    %c0_i32 = arith.constant 0 : i32
    %c0_i32_0 = arith.constant 0 : i32
    %c0_i32_1 = arith.constant 0 : i32
    return %c0_i32, %c0_i32_0 : i32, i32
  }
  func.func @transform_2(%arg0: i32) -> (i32, i32) {
    %c0_i32 = arith.constant 0 : i32
    %c0_i32_0 = arith.constant 0 : i32
    %c0_i32_1 = arith.constant 0 : i32
    return %c0_i32, %c0_i32_0 : i32, i32
  }
  func.func @transform_3(%arg0: i32) -> (i32, i32, i32) {
    %c0_i32 = arith.constant 0 : i32
    %c0_i32_0 = arith.constant 0 : i32
    %c0_i32_1 = arith.constant 0 : i32
    %c0_i32_2 = arith.constant 0 : i32
    return %c0_i32, %c0_i32_0, %c0_i32_1 : i32, i32, i32
  }
  func.func @transform_4(%arg0: i32) -> (i32, i32, i32) {
    %c0_i32 = arith.constant 0 : i32
    %c0_i32_0 = arith.constant 0 : i32
    %c0_i32_1 = arith.constant 0 : i32
    %c0_i32_2 = arith.constant 0 : i32
    return %c0_i32, %c0_i32_0, %c0_i32_1 : i32, i32, i32
  }
  func.func @transform_5(%arg0: i32) -> (i32, i32, i32) {
    %c0_i32 = arith.constant 0 : i32
    %c0_i32_0 = arith.constant 0 : i32
    %c0_i32_1 = arith.constant 0 : i32
    %c0_i32_2 = arith.constant 0 : i32
    return %c0_i32, %c0_i32_0, %c0_i32_1 : i32, i32, i32
  }
  func.func @transform_6(%arg0: i32) -> (i32, i32, i32) {
    %c0_i32 = arith.constant 0 : i32
    %c0_i32_0 = arith.constant 0 : i32
    %c0_i32_1 = arith.constant 0 : i32
    %c0_i32_2 = arith.constant 0 : i32
    return %c0_i32, %c0_i32_0, %c0_i32_1 : i32, i32, i32
  }
  func.func @transform_7(%arg0: i32) -> (i32, i32) {
    %c0_i32 = arith.constant 0 : i32
    %c0_i32_0 = arith.constant 0 : i32
    %c0_i32_1 = arith.constant 0 : i32
    return %c0_i32, %c0_i32_0 : i32, i32
  }
  func.func @transform_8(%arg0: i32) -> (i32, i32) {
    %c0_i32 = arith.constant 0 : i32
    %c0_i32_0 = arith.constant 0 : i32
    %c0_i32_1 = arith.constant 0 : i32
    return %c0_i32, %c0_i32_0 : i32, i32
  }
  func.func @transform_9(%arg0: i32) -> (i32, i32) {
    %c0_i32 = arith.constant 0 : i32
    %c0_i32_0 = arith.constant 0 : i32
    %c0_i32_1 = arith.constant 0 : i32
    return %c0_i32, %c0_i32_0 : i32, i32
  }
  func.func @transform_10(%arg0: i32) -> (i32, i32) {
    %c0_i32 = arith.constant 0 : i32
    %c0_i32_0 = arith.constant 0 : i32
    %c0_i32_1 = arith.constant 0 : i32
    return %c0_i32, %c0_i32_0 : i32, i32
  }
  func.func @transform_11(%arg0: i32) -> (i32, i32, i32) {
    %c0_i32 = arith.constant 0 : i32
    %c0_i32_0 = arith.constant 0 : i32
    %c0_i32_1 = arith.constant 0 : i32
    return %arg0, %c0_i32, %c0_i32_0 : i32, i32, i32
  }
}

</mosaic_0001>

<llo_original>
// kernel: tpu_custom_call.1
$region0: #{tpu_custom_call.1}
  #allocation0 [shape = 'u32[]', space=smem, size = 0x4, offset = 0x4, fixed_abs, tag = 'smem constant byte address 0x4 - core index']
  #allocation1 [shape = 'u32[72,128]{1,0:T(1,128)}', space=vmem, size = 0x9000, scoped, tag = 'internal scratch']
  %s0 = inlined_call_operand.hbm [shape: f32[2,16,256], index: 0, kind: input, shape index: {}]
  %s1 = inlined_call_operand.vmem [shape: bf16[16,16], index: 1, kind: input, shape index: {}]
  %s2 = inlined_call_operand.vmem [shape: f32[16,2], index: 2, kind: input, shape index: {}]
  %s3 = inlined_call_operand.vmem [shape: bf16[1,8,72], index: 3, kind: input, shape index: {}]
  %s4 = inlined_call_operand.vmem [shape: f32[1,8,2], index: 4, kind: input, shape index: {}]
  %s5 = inlined_call_operand.vmem [shape: bf16[1,8,72], index: 5, kind: input, shape index: {}]
  %s6 = inlined_call_operand.vmem [shape: f32[1,8,2], index: 6, kind: input, shape index: {}]
  %s7 = inlined_call_operand.vmem [shape: bf16[16,8], index: 7, kind: input, shape index: {}]
  %s8 = inlined_call_operand.vmem [shape: bf16[16,8], index: 8, kind: input, shape index: {}]
  %s9 = inlined_call_operand.vmem [shape: f32[16,2], index: 9, kind: input, shape index: {}]
  %s10 = inlined_call_operand.vmem [shape: f32[9,256], index: 10, kind: input, shape index: {}]
  %s11 = inlined_call_operand.hbm [shape: f32[2,16,256], index: 11, kind: output, shape index: {}]
  %s12 = sld [smem:[#allocation0]]
  $region81: #{tpu_custom_call.1} parent=0
    _
  %s14 = ssub.s32 1, %s12
  %s15 = scalar_select 0, %s14, %s12
  $region1: #{tpu_custom_call.1} parent=0
    #allocation2 [shape = 'u8[32768]{0}', space=vmem, size = 0x8000, scoped, tag = 'input window, operand 0']
    #allocation3 [shape = 's32[2]{0}', space=sflag, size = 0x8, scoped, tag = 'scoped memory for tpu_custom_call.1']
    #allocation4 [shape = 's32[2]{0}', space=sflag, size = 0x8, scoped, tag = 'scoped memory for tpu_custom_call.1']
    #allocation5 [shape = 'u8[32768]{0}', space=vmem, size = 0x8000, scoped, tag = 'output window, operand 0']
    %16 = vsyncpa [#allocation3], 0
    %s17 = scalar_lea.sflag [#allocation3], 1
    %18 = vsyncpa %s17, 0
    %19 = vsyncpa [#allocation4], 0
    %s20 = scalar_lea.sflag [#allocation4], 1
    %21 = vsyncpa %s20, 0
    loop: start=0, step=1, limit=4
    $region2: #{tpu_custom_call.1} parent=1 // loop_pre_header
      _
    $region3: #{tpu_custom_call.1} parent=1 // loop_header
      %s23 = sphi 0, %s27
      %p24 = scmp.ge.s32.totalorder %s23, 4
      %s33 = sphi 0, %s35
      %s36 = sphi 0, %s33
      %s37 = sphi 0, %s36
      %s53 = sphi 0, %s37
      %s57 = sphi 0, %s57
      %s59 = sphi 0, %s57
      %s60 = sphi 0, %s59
      %s74 = sphi 0, %s60
      %s78 = sphi 0, %s78
      %s80 = sphi 0, %s78
      %s81 = sphi 0, %s80
      %s95 = sphi 0, %s81
      %s99 = sphi 0, %s99
      %s101 = sphi 0, %s99
      %s102 = sphi 0, %s101
      %s116 = sphi 0, %s102
      %s120 = sphi 0, %s120
      %s122 = sphi 0, %s120
      %s123 = sphi 0, %s122
      %s137 = sphi 0, %s123
      %s141 = sphi 0, %s141
      %s143 = sphi 0, %s141
      %s144 = sphi 0, %s143
      %s158 = sphi 0, %s144
      %s162 = sphi 0, %s162
      %s164 = sphi 0, %s162
      %s165 = sphi 0, %s164
      %s179 = sphi 0, %s165
      %s183 = sphi 0, %s183
      %s185 = sphi 0, %s183
      %s186 = sphi 0, %s185
      %s200 = sphi 0, %s186
      %s204 = sphi 0, %s204
      %s206 = sphi 0, %s204
      %s207 = sphi 0, %s206
      %s221 = sphi 0, %s207
      %s225 = sphi 0, %s225
      %s227 = sphi 0, %s225
      %s228 = sphi 0, %s227
      %s242 = sphi 0, %s228
      %s246 = sphi 0, %s246
      %s248 = sphi 0, %s246
      %s249 = sphi 0, %s248
      %s263 = sphi 0, %s249
      %s269 = sphi 0, %s271
      %s272 = sphi 0, %s269
      %s273 = sphi 0, %s272
      %s289 = sphi 0, %s273
    $region4: #{tpu_custom_call.1} parent=1 // loop_header_branch
      %26 = sbr.rel (%p24) target = $region8
    $region5: #{tpu_custom_call.1} parent=1 // loop_body
      %s28 = ssub.s32 %s23, 1
      %s29 = ssub.s32 %s23, 2
      %s30 = sadd.s32 %s23, 1
      %s31 = ssub.s32 %s23, %s30
      %p32 = scmp.eq.s32.totalorder %s31, 0
      %s34 = sadd.s32 %s33, 1
      %s35 = scalar_select %p32, %s33, %s34
      %p38 = pneg %p32
      %p39 = scmp.eq.s32.totalorder %s23, 1
      %p40 = por %p38, %p39
      %p41 = scmp.ne.s32.totalorder %s33, %s36
      %p42 = scmp.eq.s32.totalorder %s23, 0
      %p43 = por %p41, %p42
      %p44 = scmp.ne.s32.totalorder %s33, %s36
      %p45 = scmp.eq.s32.totalorder %s28, 1
      %p46 = por %p44, %p45
      %p47 = scmp.ne.s32.totalorder %s36, %s37
      %p48 = scmp.eq.s32.totalorder %s28, 0
      %p49 = por %p47, %p48
      %p50 = scmp.ne.s32.totalorder %s36, %s37
      %p51 = scmp.eq.s32.totalorder %s29, 1
      %p52 = por %p50, %p51
      %p54 = scmp.ne.s32.totalorder %s37, %s53
      %p55 = scmp.eq.s32.totalorder %s29, 0
      %p56 = por %p54, %p55
      %s58 = sadd.s32 %s57, 1
      %p61 = scmp.eq.s32.totalorder %s23, 1
      %p62 = scmp.ne.s32.totalorder %s57, %s59
      %p63 = scmp.eq.s32.totalorder %s23, 0
      %p64 = por %p62, %p63
      %p65 = scmp.ne.s32.totalorder %s57, %s59
      %p66 = scmp.eq.s32.totalorder %s28, 1
      %p67 = por %p65, %p66
      %p68 = scmp.ne.s32.totalorder %s59, %s60
      %p69 = scmp.eq.s32.totalorder %s28, 0
      %p70 = por %p68, %p69
      %p71 = scmp.ne.s32.totalorder %s59, %s60
      %p72 = scmp.eq.s32.totalorder %s29, 1
      %p73 = por %p71, %p72
      %p75 = scmp.ne.s32.totalorder %s60, %s74
      %p76 = scmp.eq.s32.totalorder %s29, 0
      %p77 = por %p75, %p76
      %s79 = sadd.s32 %s78, 1
      %p82 = scmp.eq.s32.totalorder %s23, 1
      %p83 = scmp.ne.s32.totalorder %s78, %s80
      %p84 = scmp.eq.s32.totalorder %s23, 0
      %p85 = por %p83, %p84
      %p86 = scmp.ne.s32.totalorder %s78, %s80
      %p87 = scmp.eq.s32.totalorder %s28, 1
      %p88 = por %p86, %p87
      %p89 = scmp.ne.s32.totalorder %s80, %s81
      %p90 = scmp.eq.s32.totalorder %s28, 0
      %p91 = por %p89, %p90
      %p92 = scmp.ne.s32.totalorder %s80, %s81
      %p93 = scmp.eq.s32.totalorder %s29, 1
      %p94 = por %p92, %p93
      %p96 = scmp.ne.s32.totalorder %s81, %s95
      %p97 = scmp.eq.s32.totalorder %s29, 0
      %p98 = por %p96, %p97
      %s100 = sadd.s32 %s99, 1
      %p103 = scmp.eq.s32.totalorder %s23, 1
      %p104 = scmp.ne.s32.totalorder %s99, %s101
      %p105 = scmp.eq.s32.totalorder %s23, 0
      %p106 = por %p104, %p105
      %p107 = scmp.ne.s32.totalorder %s99, %s101
      %p108 = scmp.eq.s32.totalorder %s28, 1
      %p109 = por %p107, %p108
      %p110 = scmp.ne.s32.totalorder %s101, %s102
      %p111 = scmp.eq.s32.totalorder %s28, 0
      %p112 = por %p110, %p111
      %p113 = scmp.ne.s32.totalorder %s101, %s102
      %p114 = scmp.eq.s32.totalorder %s29, 1
      %p115 = por %p113, %p114
      %p117 = scmp.ne.s32.totalorder %s102, %s116
      %p118 = scmp.eq.s32.totalorder %s29, 0
      %p119 = por %p117, %p118
      %s121 = sadd.s32 %s120, 1
      %p124 = scmp.eq.s32.totalorder %s23, 1
      %p125 = scmp.ne.s32.totalorder %s120, %s122
      %p126 = scmp.eq.s32.totalorder %s23, 0
      %p127 = por %p125, %p126
      %p128 = scmp.ne.s32.totalorder %s120, %s122
      %p129 = scmp.eq.s32.totalorder %s28, 1
      %p130 = por %p128, %p129
      %p131 = scmp.ne.s32.totalorder %s122, %s123
      %p132 = scmp.eq.s32.totalorder %s28, 0
      %p133 = por %p131, %p132
      %p134 = scmp.ne.s32.totalorder %s122, %s123
      %p135 = scmp.eq.s32.totalorder %s29, 1
      %p136 = por %p134, %p135
      %p138 = scmp.ne.s32.totalorder %s123, %s137
      %p139 = scmp.eq.s32.totalorder %s29, 0
      %p140 = por %p138, %p139
      %s142 = sadd.s32 %s141, 1
      %p145 = scmp.eq.s32.totalorder %s23, 1
      %p146 = scmp.ne.s32.totalorder %s141, %s143
      %p147 = scmp.eq.s32.totalorder %s23, 0
      %p148 = por %p146, %p147
      %p149 = scmp.ne.s32.totalorder %s141, %s143
      %p150 = scmp.eq.s32.totalorder %s28, 1
      %p151 = por %p149, %p150
      %p152 = scmp.ne.s32.totalorder %s143, %s144
      %p153 = scmp.eq.s32.totalorder %s28, 0
      %p154 = por %p152, %p153
      %p155 = scmp.ne.s32.totalorder %s143, %s144
      %p156 = scmp.eq.s32.totalorder %s29, 1
      %p157 = por %p155, %p156
      %p159 = scmp.ne.s32.totalorder %s144, %s158
      %p160 = scmp.eq.s32.totalorder %s29, 0
      %p161 = por %p159, %p160
      %s163 = sadd.s32 %s162, 1
      %p166 = scmp.eq.s32.totalorder %s23, 1
      %p167 = scmp.ne.s32.totalorder %s162, %s164
      %p168 = scmp.eq.s32.totalorder %s23, 0
      %p169 = por %p167, %p168
      %p170 = scmp.ne.s32.totalorder %s162, %s164
      %p171 = scmp.eq.s32.totalorder %s28, 1
      %p172 = por %p170, %p171
      %p173 = scmp.ne.s32.totalorder %s164, %s165
      %p174 = scmp.eq.s32.totalorder %s28, 0
      %p175 = por %p173, %p174
      %p176 = scmp.ne.s32.totalorder %s164, %s165
      %p177 = scmp.eq.s32.totalorder %s29, 1
      %p178 = por %p176, %p177
      %p180 = scmp.ne.s32.totalorder %s165, %s179
      %p181 = scmp.eq.s32.totalorder %s29, 0
      %p182 = por %p180, %p181
      %s184 = sadd.s32 %s183, 1
      %p187 = scmp.eq.s32.totalorder %s23, 1
      %p188 = scmp.ne.s32.totalorder %s183, %s185
      %p189 = scmp.eq.s32.totalorder %s23, 0
      %p190 = por %p188, %p189
      %p191 = scmp.ne.s32.totalorder %s183, %s185
      %p192 = scmp.eq.s32.totalorder %s28, 1
      %p193 = por %p191, %p192
      %p194 = scmp.ne.s32.totalorder %s185, %s186
      %p195 = scmp.eq.s32.totalorder %s28, 0
      %p196 = por %p194, %p195
      %p197 = scmp.ne.s32.totalorder %s185, %s186
      %p198 = scmp.eq.s32.totalorder %s29, 1
      %p199 = por %p197, %p198
      %p201 = scmp.ne.s32.totalorder %s186, %s200
      %p202 = scmp.eq.s32.totalorder %s29, 0
      %p203 = por %p201, %p202
      %s205 = sadd.s32 %s204, 1
      %p208 = scmp.eq.s32.totalorder %s23, 1
      %p209 = scmp.ne.s32.totalorder %s204, %s206
      %p210 = scmp.eq.s32.totalorder %s23, 0
      %p211 = por %p209, %p210
      %p212 = scmp.ne.s32.totalorder %s204, %s206
      %p213 = scmp.eq.s32.totalorder %s28, 1
      %p214 = por %p212, %p213
      %p215 = scmp.ne.s32.totalorder %s206, %s207
      %p216 = scmp.eq.s32.totalorder %s28, 0
      %p217 = por %p215, %p216
      %p218 = scmp.ne.s32.totalorder %s206, %s207
      %p219 = scmp.eq.s32.totalorder %s29, 1
      %p220 = por %p218, %p219
      %p222 = scmp.ne.s32.totalorder %s207, %s221
      %p223 = scmp.eq.s32.totalorder %s29, 0
      %p224 = por %p222, %p223
      %s226 = sadd.s32 %s225, 1
      %p229 = scmp.eq.s32.totalorder %s23, 1
      %p230 = scmp.ne.s32.totalorder %s225, %s227
      %p231 = scmp.eq.s32.totalorder %s23, 0
      %p232 = por %p230, %p231
      %p233 = scmp.ne.s32.totalorder %s225, %s227
      %p234 = scmp.eq.s32.totalorder %s28, 1
      %p235 = por %p233, %p234
      %p236 = scmp.ne.s32.totalorder %s227, %s228
      %p237 = scmp.eq.s32.totalorder %s28, 0
      %p238 = por %p236, %p237
      %p239 = scmp.ne.s32.totalorder %s227, %s228
      %p240 = scmp.eq.s32.totalorder %s29, 1
      %p241 = por %p239, %p240
      %p243 = scmp.ne.s32.totalorder %s228, %s242
      %p244 = scmp.eq.s32.totalorder %s29, 0
      %p245 = por %p243, %p244
      %s247 = sadd.s32 %s246, 1
      %p250 = scmp.eq.s32.totalorder %s23, 1
      %p251 = scmp.ne.s32.totalorder %s246, %s248
      %p252 = scmp.eq.s32.totalorder %s23, 0
      %p253 = por %p251, %p252
      %p254 = scmp.ne.s32.totalorder %s246, %s248
      %p255 = scmp.eq.s32.totalorder %s28, 1
      %p256 = por %p254, %p255
      %p257 = scmp.ne.s32.totalorder %s248, %s249
      %p258 = scmp.eq.s32.totalorder %s28, 0
      %p259 = por %p257, %p258
      %p260 = scmp.ne.s32.totalorder %s248, %s249
      %p261 = scmp.eq.s32.totalorder %s29, 1
      %p262 = por %p260, %p261
      %p264 = scmp.ne.s32.totalorder %s249, %s263
      %p265 = scmp.eq.s32.totalorder %s29, 0
      %p266 = por %p264, %p265
      %s267 = ssub.s32 %s23, %s30
      %p268 = scmp.eq.s32.totalorder %s267, 0
      %s270 = sadd.s32 %s269, 1
      %s271 = scalar_select %p268, %s269, %s270
      %p274 = pneg %p268
      %p275 = scmp.eq.s32.totalorder %s23, 1
      %p276 = por %p274, %p275
      %p277 = scmp.ne.s32.totalorder %s269, %s272
      %p278 = scmp.eq.s32.totalorder %s23, 0
      %p279 = por %p277, %p278
      %p280 = scmp.ne.s32.totalorder %s269, %s272
      %p281 = scmp.eq.s32.totalorder %s28, 1
      %p282 = por %p280, %p281
      %p283 = scmp.ne.s32.totalorder %s272, %s273
      %p284 = scmp.eq.s32.totalorder %s28, 0
      %p285 = por %p283, %p284
      %p286 = scmp.ne.s32.totalorder %s272, %s273
      %p287 = scmp.eq.s32.totalorder %s29, 1
      %p288 = por %p286, %p287
      %p290 = scmp.ne.s32.totalorder %s273, %s289
      %p291 = scmp.eq.s32.totalorder %s29, 0
      %p292 = por %p290, %p291
      %p293 = scmp.le.s32.totalorder 1, %s23
      %p294 = scmp.lt.s32.totalorder %s23, 3
      %p295 = pnand %p293, %p294
      %p296 = pneg %p295
      // Predicated region
      $region9: #{tpu_custom_call.1} parent=5 // pred_check
        _
      $region10: #{tpu_custom_call.1} parent=5 // pred_check_branch
        %298 = sbr.rel (%p295) target = $region12
      $region11: #{tpu_custom_call.1} parent=5 // pred_region
        %s299 = ssub.s32 %s23, 1
        // Predicated region
        $region13: #{tpu_custom_call.1} parent=11 // pred_check
          %p300 = pneg %p70
        $region14: #{tpu_custom_call.1} parent=11 // pred_check_branch
          %302 = sbr.rel (%p300) target = $region16
        $region15: #{tpu_custom_call.1} parent=11 // pred_region
          _
        $region16: #{tpu_custom_call.1} parent=11 // pred_fallthru
          _
        // Predicated region
        $region17: #{tpu_custom_call.1} parent=11 // pred_check
          %p303 = pneg %p91
        $region18: #{tpu_custom_call.1} parent=11 // pred_check_branch
          %305 = sbr.rel (%p303) target = $region20
        $region19: #{tpu_custom_call.1} parent=11 // pred_region
          _
        $region20: #{tpu_custom_call.1} parent=11 // pred_fallthru
          _
        // Predicated region
        $region21: #{tpu_custom_call.1} parent=11 // pred_check
          %p306 = pneg %p112
        $region22: #{tpu_custom_call.1} parent=11 // pred_check_branch
          %308 = sbr.rel (%p306) target = $region24
        $region23: #{tpu_custom_call.1} parent=11 // pred_region
          _
        $region24: #{tpu_custom_call.1} parent=11 // pred_fallthru
          _
        // Predicated region
        $region25: #{tpu_custom_call.1} parent=11 // pred_check
          %p309 = pneg %p133
        $region26: #{tpu_custom_call.1} parent=11 // pred_check_branch
          %311 = sbr.rel (%p309) target = $region28
        $region27: #{tpu_custom_call.1} parent=11 // pred_region
          _
        $region28: #{tpu_custom_call.1} parent=11 // pred_fallthru
          _
        // Predicated region
        $region29: #{tpu_custom_call.1} parent=11 // pred_check
          %p312 = pneg %p154
        $region30: #{tpu_custom_call.1} parent=11 // pred_check_branch
          %314 = sbr.rel (%p312) target = $region32
        $region31: #{tpu_custom_call.1} parent=11 // pred_region
          _
        $region32: #{tpu_custom_call.1} parent=11 // pred_fallthru
          _
        // Predicated region
        $region33: #{tpu_custom_call.1} parent=11 // pred_check
          %p315 = pneg %p175
        $region34: #{tpu_custom_call.1} parent=11 // pred_check_branch
          %317 = sbr.rel (%p315) target = $region36
        $region35: #{tpu_custom_call.1} parent=11 // pred_region
          _
        $region36: #{tpu_custom_call.1} parent=11 // pred_fallthru
          _
        // Predicated region
        $region37: #{tpu_custom_call.1} parent=11 // pred_check
          %p318 = pneg %p196
        $region38: #{tpu_custom_call.1} parent=11 // pred_check_branch
          %320 = sbr.rel (%p318) target = $region40
        $region39: #{tpu_custom_call.1} parent=11 // pred_region
          _
        $region40: #{tpu_custom_call.1} parent=11 // pred_fallthru
          _
        // Predicated region
        $region41: #{tpu_custom_call.1} parent=11 // pred_check
          %p321 = pneg %p217
        $region42: #{tpu_custom_call.1} parent=11 // pred_check_branch
          %323 = sbr.rel (%p321) target = $region44
        $region43: #{tpu_custom_call.1} parent=11 // pred_region
          _
        $region44: #{tpu_custom_call.1} parent=11 // pred_fallthru
          _
        // Predicated region
        $region45: #{tpu_custom_call.1} parent=11 // pred_check
          %p324 = pneg %p238
        $region46: #{tpu_custom_call.1} parent=11 // pred_check_branch
          %326 = sbr.rel (%p324) target = $region48
        $region47: #{tpu_custom_call.1} parent=11 // pred_region
          _
        $region48: #{tpu_custom_call.1} parent=11 // pred_fallthru
          _
        // Predicated region
        $region49: #{tpu_custom_call.1} parent=11 // pred_check
          %p327 = pneg %p259
        $region50: #{tpu_custom_call.1} parent=11 // pred_check_branch
          %329 = sbr.rel (%p327) target = $region52
        $region51: #{tpu_custom_call.1} parent=11 // pred_region
          _
        $region52: #{tpu_custom_call.1} parent=11 // pred_fallthru
          _
      $region12: #{tpu_custom_call.1} parent=5 // pred_fallthru
        _
      %p330 = scmp.lt.s32.totalorder %s23, 2
      // Predicated region
      $region53: #{tpu_custom_call.1} parent=5 // pred_check
        %p331 = pneg %p330
      $region54: #{tpu_custom_call.1} parent=5 // pred_check_branch
        %333 = sbr.rel (%p331) target = $region56
      $region55: #{tpu_custom_call.1} parent=5 // pred_region
        // Predicated region
        $region57: #{tpu_custom_call.1} parent=55 // pred_check
          %p334 = pneg %p43
        $region58: #{tpu_custom_call.1} parent=55 // pred_check_branch
          %336 = sbr.rel (%p334) target = $region60
        $region59: #{tpu_custom_call.1} parent=55 // pred_region
          %s337 = sand.u32 %s33, 1
          %s338 = scalar_lea.sflag [#allocation3], %s337
          %s339 = sand.u32 %s33, 1
          %s340 = smul.addr %s339, 32
          %s341 = scalar_lea.vmem [#allocation2], %s340
          %343 = vsyncadd %s338, 0
          %s344 = smul.addr %s23, 4
          %s345 = smul.addr %s344, 8
          %s346 = scalar_lea.hbm %s0, %s345
          %s347 = sshll.u32 %s346, 4
          %s348 = int_to_ptr.hbm [resolvable:$true] %s347
          %s349 = sshll.u32 %s341, 4
          %s350 = int_to_ptr.vmem [resolvable:$true] %s349
          %355 = dma.hbm_to_vmem [thread:$0]  %s348, 512, %s350, %s338, 256, 256, 16
        $region60: #{tpu_custom_call.1} parent=55 // pred_fallthru
          _
      $region56: #{tpu_custom_call.1} parent=5 // pred_fallthru
        _
      %p356 = scmp.le.s32.totalorder 1, %s23
      %p357 = scmp.lt.s32.totalorder %s23, 3
      %p358 = pnand %p356, %p357
      %p359 = pneg %p358
      // Predicated region
      $region61: #{tpu_custom_call.1} parent=5 // pred_check
        _
      $region62: #{tpu_custom_call.1} parent=5 // pred_check_branch
        %361 = sbr.rel (%p358) target = $region64
      $region63: #{tpu_custom_call.1} parent=5 // pred_region
        %s362 = ssub.s32 %s23, 1
        %s363 = sand.u32 %s36, 1
        %s364 = scalar_lea.sflag [#allocation3], %s363
        %s365 = sand.u32 %s36, 1
        %s366 = smul.addr %s365, 32
        %s367 = scalar_lea.vmem [#allocation2], %s366
        // Predicated region
        $region65: #{tpu_custom_call.1} parent=63 // pred_check
          %p368 = pneg %p49
        $region66: #{tpu_custom_call.1} parent=63 // pred_check_branch
          %370 = sbr.rel (%p368) target = $region68
        $region67: #{tpu_custom_call.1} parent=63 // pred_region
          %372 = dma.done %s364, 512
        $region68: #{tpu_custom_call.1} parent=63 // pred_fallthru
          _
        %s373 = sand.u32 %s36, 1
        %s374 = scalar_lea.sflag [#allocation3], %s373
        %s375 = sand.u32 %s36, 1
        %s376 = smul.addr %s375, 32
        %s377 = scalar_lea.vmem [#allocation2], %s376
        %p378 = pneg %p49
        %p379 = pneg %p46
        %p380 = pneg %p70
        %p381 = pneg %p67
        %p382 = pneg %p91
        %p383 = pneg %p88
        %p384 = pneg %p112
        %p385 = pneg %p109
        %p386 = pneg %p133
        %p387 = pneg %p130
        %p388 = pneg %p154
        %p389 = pneg %p151
        %p390 = pneg %p175
        %p391 = pneg %p172
        %p392 = pneg %p196
        %p393 = pneg %p193
        %p394 = pneg %p217
        %p395 = pneg %p214
        %p396 = pneg %p238
        %p397 = pneg %p235
        %p398 = pneg %p259
        %p399 = pneg %p256
        %p400 = pneg %p285
        %p401 = pneg %p282
        %s402 = sand.u32 %s272, 1
        %s403 = scalar_lea.sflag [#allocation4], %s402
        %s404 = sand.u32 %s272, 1
        %s405 = smul.addr %s404, 32
        %s406 = scalar_lea.vmem [#allocation5], %s405
        %v408 = vld [vmem:[%s367] sm:$0xff]
        %v409 = vld [vmem:[%s367 + $0x8] sm:$0xff]
        %v410 = vld [vmem:[%s367 + $0x10] sm:$0xff]
        %v411 = vld [vmem:[%s367 + $0x18] sm:$0xff]
        %v412 = vpack.c.bf16 %v410, %v408
        %v413 = vpack.c.bf16 %v411, %v409
        %v414 = vld [vmem:[%s1] sm:$0xf]
        %v415 = vld [vmem:[%s1 + $0x4] sm:$0xf]
        %v418 = vunpack.c.l.b16 %v414
        %v419 = vunpack.c.l.b16 %v415
        %v420 = vpack.c.b16 %v419, %v418
        %vm421 = vcmask 130048
        %v423 = vsel %vm421, %v420, 0
        %425 = vmatpush.bf16.msra.mxu0 0
        %426 = vmatpush.bf16.msra.mxu0 0
        %427 = vmatpush.bf16.msra.mxu0 0
        %428 = vmatpush.bf16.msra.mxu0 0
        %429 = vmatpush.bf16.msra.mxu0 0
        %430 = vmatpush.bf16.msra.mxu0 0
        %431 = vmatpush.bf16.msra.mxu0 0
        %432 = vmatpush.bf16.msra.mxu0 %v412
        %433 = vmatmul.bf16.gmra.mxu0 %v423
        %v434 = vpop.f32.mrf.mxu0
        %v435 = vadd.f32 0.0, %v434
        %v436 = vpop.f32.mrf.mxu0
        %v437 = vadd.f32 0.0, %v436
        %438 = vdwg.mxu0
        %439 = vmatpush.bf16.msra.mxu0 0
        %440 = vmatpush.bf16.msra.mxu0 0
        %441 = vmatpush.bf16.msra.mxu0 0
        %442 = vmatpush.bf16.msra.mxu0 0
        %443 = vmatpush.bf16.msra.mxu0 0
        %444 = vmatpush.bf16.msra.mxu0 0
        %445 = vmatpush.bf16.msra.mxu0 0
        %446 = vmatpush.bf16.msra.mxu0 %v413
        %447 = vmatmul.bf16.gmra.mxu0 %v423
        %v448 = vpop.f32.mrf.mxu0
        %v449 = vadd.f32 0.0, %v448
        %v450 = vpop.f32.mrf.mxu0
        %v451 = vadd.f32 0.0, %v450
        %452 = vdwg.mxu0
        %v453 = vld [vmem:[%s2] sm:$0xff]
        %v454 = vld [vmem:[%s2 + $0x8] sm:$0xff]
        %456 = vset.pattern.permute.xlu0 0
        %457 = vperm.xlu0 %456, %v453
        %v458 = vpop.permute.xlu0 %457
        %461 = vset.pattern.permute.xlu0 0
        %462 = vperm.xlu0 %461, %v454
        %v463 = vpop.permute.xlu0 %462
        %v465 = vmul.f32 %v435, %v458
        %v466 = vmul.f32 %v449, %v458
        %v467 = vmul.f32 %v437, %v463
        %v468 = vmul.f32 %v451, %v463
        %469 = vset.pattern.permute.xlu0 1
        %470 = vperm.xlu0 %469, %v453
        %v471 = vpop.permute.xlu0 %470
        %473 = vset.pattern.permute.xlu0 1
        %474 = vperm.xlu0 %473, %v454
        %v475 = vpop.permute.xlu0 %474
        %v477 = vadd.f32 %v465, %v471
        %v478 = vadd.f32 %v466, %v471
        %v479 = vadd.f32 %v467, %v475
        %v480 = vadd.f32 %v468, %v475
        %v481 = vsub.f32 0.0, %v477
        %v482 = vsub.f32 0.0, %v478
        %v483 = vsub.f32 0.0, %v479
        %v484 = vsub.f32 0.0, %v480
        %v485 = vmul.f32 %v481, 1.442695
        %v486 = vpow.pop %v485
        %v487 = vmul.f32 %v482, 1.442695
        %v488 = vpow.pop %v487
        %v489 = vmul.f32 %v483, 1.442695
        %v490 = vpow.pop %v489
        %v491 = vmul.f32 %v484, 1.442695
        %v492 = vpow.pop %v491
        %v493 = vadd.f32 %v486, 1.0
        %v494 = vadd.f32 %v488, 1.0
        %v495 = vadd.f32 %v490, 1.0
        %v496 = vadd.f32 %v492, 1.0
        %v497 = vrcp.pop %v493
        %v498 = vrcp.pop %v494
        %v499 = vrcp.pop %v495
        %v500 = vrcp.pop %v496
        %v501 = vmul.f32 %v477, %v497
        %v502 = vmul.f32 %v478, %v498
        %v503 = vmul.f32 %v479, %v499
        %v504 = vmul.f32 %v480, %v500
        %v505 = vld [vmem:[%s3] sm:$0xf]
        %v506 = vld [vmem:[%s4] sm:$0xff]
        %507 = vrot.lane.b32.xlu0 %v501, 17
        %v508 = vpop.permute.xlu0 %507
        %509 = vrot.lane.b32.xlu0 %v502, 17
        %v510 = vpop.permute.xlu0 %509
        %v511 = vlaneseq
        %v512 = vand.u32 %v511, 127
        %vm513 = vcmp.lt.s32.totalorder %v512, 17
        %v514 = vsel %vm513, %v508, %v510
        %v515 = vsel %vm513, %v510, %v508
        %v516 = vld [vmem:[%s10] ss:$8 sm:$0x3]
        %v518 = vperm.slane %v516, 0
        %v519 = vperm.slane %v516, 1
        %v522 = vmul.f32 %v515, %v518
        %v523 = vmul.f32 %v514, %v519
        %524 = vrot.lane.b32.xlu0 %v501, 16
        %v525 = vpop.permute.xlu0 %524
        %526 = vrot.lane.b32.xlu0 %v502, 16
        %v527 = vpop.permute.xlu0 %526
        %vm528 = vcmp.lt.s32.totalorder %v512, 16
        %v529 = vsel %vm528, %v525, %v527
        %v530 = vsel %vm528, %v527, %v525
        %s531 = scalar_lea.vmem %s10, 1
        %v532 = vld [vmem:[%s531] ss:$8 sm:$0x3]
        %v534 = vperm.slane %v532, 0
        %v535 = vperm.slane %v532, 1
        %v538 = vmul.f32 %v530, %v534
        %v539 = vmul.f32 %v529, %v535
        %540 = vrot.lane.b32.xlu0 %v501, 15
        %v541 = vpop.permute.xlu0 %540
        %542 = vrot.lane.b32.xlu0 %v502, 15
        %v543 = vpop.permute.xlu0 %542
        %vm544 = vcmp.lt.s32.totalorder %v512, 15
        %v545 = vsel %vm544, %v541, %v543
        %v546 = vsel %vm544, %v543, %v541
        %s547 = scalar_lea.vmem %s10, 2
        %v548 = vld [vmem:[%s547] ss:$8 sm:$0x3]
        %v550 = vperm.slane %v548, 0
        %v551 = vperm.slane %v548, 1
        %v554 = vmul.f32 %v546, %v550
        %v555 = vmul.f32 %v545, %v551
        %556 = vrot.lane.b32.xlu0 %v501, 1
        %v557 = vpop.permute.xlu0 %556
        %558 = vrot.lane.b32.xlu0 %v502, 1
        %v559 = vpop.permute.xlu0 %558
        %vm560 = vcmp.lt.s32.totalorder %v512, 1
        %v561 = vsel %vm560, %v557, %v559
        %v562 = vsel %vm560, %v559, %v557
        %s563 = scalar_lea.vmem %s10, 3
        %v564 = vld [vmem:[%s563] ss:$8 sm:$0x3]
        %v566 = vperm.slane %v564, 0
        %v567 = vperm.slane %v564, 1
        %v570 = vmul.f32 %v562, %v566
        %v571 = vmul.f32 %v561, %v567
        %572 = vrot.lane.b32.xlu0 %v501, 127
        %v573 = vpop.permute.xlu0 %572
        %574 = vrot.lane.b32.xlu0 %v502, 127
        %v575 = vpop.permute.xlu0 %574
        %vm576 = vcmp.lt.s32.totalorder %v512, 127
        %v577 = vsel %vm576, %v573, %v575
        %v578 = vsel %vm576, %v575, %v573
        %s579 = scalar_lea.vmem %s10, 5
        %v580 = vld [vmem:[%s579] ss:$8 sm:$0x3]
        %v582 = vperm.slane %v580, 0
        %v583 = vperm.slane %v580, 1
        %v586 = vmul.f32 %v577, %v582
        %v587 = vmul.f32 %v578, %v583
        %588 = vrot.lane.b32.xlu0 %v501, 113
        %v589 = vpop.permute.xlu0 %588
        %590 = vrot.lane.b32.xlu0 %v502, 113
        %v591 = vpop.permute.xlu0 %590
        %vm592 = vcmp.lt.s32.totalorder %v512, 113
        %v593 = vsel %vm592, %v589, %v591
        %v594 = vsel %vm592, %v591, %v589
        %s595 = scalar_lea.vmem %s10, 6
        %v596 = vld [vmem:[%s595] ss:$8 sm:$0x3]
        %v598 = vperm.slane %v596, 0
        %v599 = vperm.slane %v596, 1
        %v602 = vmul.f32 %v593, %v598
        %v603 = vmul.f32 %v594, %v599
        %604 = vrot.lane.b32.xlu0 %v501, 112
        %v605 = vpop.permute.xlu0 %604
        %606 = vrot.lane.b32.xlu0 %v502, 112
        %v607 = vpop.permute.xlu0 %606
        %vm608 = vcmp.lt.s32.totalorder %v512, 112
        %v609 = vsel %vm608, %v605, %v607
        %v610 = vsel %vm608, %v607, %v605
        %s611 = scalar_lea.vmem %s10, 7
        %v612 = vld [vmem:[%s611] ss:$8 sm:$0x3]
        %v614 = vperm.slane %v612, 0
        %v615 = vperm.slane %v612, 1
        %v618 = vmul.f32 %v609, %v614
        %v619 = vmul.f32 %v610, %v615
        %620 = vrot.lane.b32.xlu0 %v501, 111
        %v621 = vpop.permute.xlu0 %620
        %622 = vrot.lane.b32.xlu0 %v502, 111
        %v623 = vpop.permute.xlu0 %622
        %vm624 = vcmp.lt.s32.totalorder %v512, 111
        %v625 = vsel %vm624, %v621, %v623
        %v626 = vsel %vm624, %v623, %v621
        %s627 = scalar_lea.vmem %s10, 16
        %v628 = vld [vmem:[%s627] ss:$8 sm:$0x3]
        %v630 = vperm.slane %v628, 0
        %v631 = vperm.slane %v628, 1
        %v634 = vmul.f32 %v625, %v630
        %v635 = vmul.f32 %v626, %v631
        %v636 = vpack.c.bf16 %v538, %v522
        %v637 = vpack.c.bf16 %v539, %v523
        %v638 = vpack.c.bf16 %v570, %v554
        %v639 = vpack.c.bf16 %v571, %v555
        %v640 = vpack.c.bf16 %v586, %v501
        %v641 = vpack.c.bf16 %v587, %v502
        %v642 = vpack.c.bf16 %v618, %v602
        %v643 = vpack.c.bf16 %v619, %v603
        %v644 = vpack.c.bf16 %v634, %v634
        %v645 = vpack.c.bf16 %v635, %v635
        %vm646 = vcmask 588800
        %v648 = vsel %vm646, %v505, 0
        %vm650 = vcmask 1043456
        %v652 = vsel %vm650, %v644, 0
        %v655 = vsel %vm650, %v645, 0
        %657 = vmatpush.bf16.msra.mxu0 0
        %658 = vmatpush.bf16.msra.mxu0 0
        %659 = vmatpush.bf16.msra.mxu0 0
        %660 = vmatpush.bf16.msra.mxu0 %v652
        %661 = vmatpush.bf16.msra.mxu0 %v642
        %662 = vmatpush.bf16.msra.mxu0 %v640
        %663 = vmatpush.bf16.msra.mxu0 %v638
        %664 = vmatpush.bf16.msra.mxu0 %v636
        %665 = vmatmul.bf16.gmra.mxu0 %v648
        %v666 = vpop.f32.mrf.mxu0
        %v667 = vadd.f32 0.0, %v666
        %v668 = vpop.f32.mrf.mxu0
        %669 = vdwg.mxu0
        %670 = vmatpush.bf16.msra.mxu0 0
        %671 = vmatpush.bf16.msra.mxu0 0
        %672 = vmatpush.bf16.msra.mxu0 0
        %673 = vmatpush.bf16.msra.mxu0 %v655
        %674 = vmatpush.bf16.msra.mxu0 %v643
        %675 = vmatpush.bf16.msra.mxu0 %v641
        %676 = vmatpush.bf16.msra.mxu0 %v639
        %677 = vmatpush.bf16.msra.mxu0 %v637
        %678 = vmatmul.bf16.gmra.mxu0 %v648
        %v679 = vpop.f32.mrf.mxu0
        %v680 = vadd.f32 0.0, %v679
        %v681 = vpop.f32.mrf.mxu0
        %682 = vdwg.mxu0
        %684 = vset.pattern.permute.xlu0 0
        %685 = vperm.xlu0 %684, %v506
        %v686 = vpop.permute.xlu0 %685
        %v688 = vmul.f32 %v667, %v686
        %v689 = vmul.f32 %v680, %v686
        %690 = vset.pattern.permute.xlu0 1
        %691 = vperm.xlu0 %690, %v506
        %v692 = vpop.permute.xlu0 %691
        %v694 = vadd.f32 %v688, %v692
        %v695 = vadd.f32 %v689, %v692
        %v696 = vsub.f32 0.0, %v694
        %v697 = vsub.f32 0.0, %v695
        %v698 = vmul.f32 %v696, 1.442695
        %v699 = vpow.pop %v698
        %v700 = vmul.f32 %v697, 1.442695
        %v701 = vpow.pop %v700
        %v702 = vadd.f32 %v699, 1.0
        %v703 = vadd.f32 %v701, 1.0
        %v704 = vrcp.pop %v702
        %v705 = vrcp.pop %v703
        %v706 = vmul.f32 %v694, %v704
        %v707 = vmul.f32 %v695, %v705
        %v708 = vld [vmem:[%s5] sm:$0xf]
        %v709 = vld [vmem:[%s6] sm:$0xff]
        %710 = vrot.lane.b32.xlu0 %v706, 17
        %v711 = vpop.permute.xlu0 %710
        %712 = vrot.lane.b32.xlu0 %v707, 17
        %v713 = vpop.permute.xlu0 %712
        %v714 = vsel %vm513, %v711, %v713
        %v715 = vsel %vm513, %v713, %v711
        %v716 = vmul.f32 %v715, %v518
        %v717 = vmul.f32 %v714, %v519
        %718 = vrot.lane.b32.xlu0 %v706, 16
        %v719 = vpop.permute.xlu0 %718
        %720 = vrot.lane.b32.xlu0 %v707, 16
        %v721 = vpop.permute.xlu0 %720
        %v722 = vsel %vm528, %v719, %v721
        %v723 = vsel %vm528, %v721, %v719
        %v724 = vmul.f32 %v723, %v534
        %v725 = vmul.f32 %v722, %v535
        %726 = vrot.lane.b32.xlu0 %v706, 15
        %v727 = vpop.permute.xlu0 %726
        %728 = vrot.lane.b32.xlu0 %v707, 15
        %v729 = vpop.permute.xlu0 %728
        %v730 = vsel %vm544, %v727, %v729
        %v731 = vsel %vm544, %v729, %v727
        %v732 = vmul.f32 %v731, %v550
        %v733 = vmul.f32 %v730, %v551
        %734 = vrot.lane.b32.xlu0 %v706, 1
        %v735 = vpop.permute.xlu0 %734
        %736 = vrot.lane.b32.xlu0 %v707, 1
        %v737 = vpop.permute.xlu0 %736
        %v738 = vsel %vm560, %v735, %v737
        %v739 = vsel %vm560, %v737, %v735
        %v740 = vmul.f32 %v739, %v566
        %v741 = vmul.f32 %v738, %v567
        %742 = vrot.lane.b32.xlu0 %v706, 127
        %v743 = vpop.permute.xlu0 %742
        %744 = vrot.lane.b32.xlu0 %v707, 127
        %v745 = vpop.permute.xlu0 %744
        %v746 = vsel %vm576, %v743, %v745
        %v747 = vsel %vm576, %v745, %v743
        %v748 = vmul.f32 %v746, %v582
        %v749 = vmul.f32 %v747, %v583
        %750 = vrot.lane.b32.xlu0 %v706, 113
        %v751 = vpop.permute.xlu0 %750
        %752 = vrot.lane.b32.xlu0 %v707, 113
        %v753 = vpop.permute.xlu0 %752
        %v754 = vsel %vm592, %v751, %v753
        %v755 = vsel %vm592, %v753, %v751
        %v756 = vmul.f32 %v754, %v598
        %v757 = vmul.f32 %v755, %v599
        %758 = vrot.lane.b32.xlu0 %v706, 112
        %v759 = vpop.permute.xlu0 %758
        %760 = vrot.lane.b32.xlu0 %v707, 112
        %v761 = vpop.permute.xlu0 %760
        %v762 = vsel %vm608, %v759, %v761
        %v763 = vsel %vm608, %v761, %v759
        %v764 = vmul.f32 %v762, %v614
        %v765 = vmul.f32 %v763, %v615
        %766 = vrot.lane.b32.xlu0 %v706, 111
        %v767 = vpop.permute.xlu0 %766
        %768 = vrot.lane.b32.xlu0 %v707, 111
        %v769 = vpop.permute.xlu0 %768
        %v770 = vsel %vm624, %v767, %v769
        %v771 = vsel %vm624, %v769, %v767
        %v772 = vmul.f32 %v770, %v630
        %v773 = vmul.f32 %v771, %v631
        %v774 = vpack.c.bf16 %v724, %v716
        %v775 = vpack.c.bf16 %v725, %v717
        %v776 = vpack.c.bf16 %v740, %v732
        %v777 = vpack.c.bf16 %v741, %v733
        %v778 = vpack.c.bf16 %v748, %v706
        %v779 = vpack.c.bf16 %v749, %v707
        %v780 = vpack.c.bf16 %v764, %v756
        %v781 = vpack.c.bf16 %v765, %v757
        %v782 = vpack.c.bf16 %v772, %v772
        %v783 = vpack.c.bf16 %v773, %v773
        %v785 = vsel %vm646, %v708, 0
        %v788 = vsel %vm650, %v782, 0
        %v791 = vsel %vm650, %v783, 0
        %793 = vmatpush.bf16.msra.mxu0 0
        %794 = vmatpush.bf16.msra.mxu0 0
        %795 = vmatpush.bf16.msra.mxu0 0
        %796 = vmatpush.bf16.msra.mxu0 %v788
        %797 = vmatpush.bf16.msra.mxu0 %v780
        %798 = vmatpush.bf16.msra.mxu0 %v778
        %799 = vmatpush.bf16.msra.mxu0 %v776
        %800 = vmatpush.bf16.msra.mxu0 %v774
        %801 = vmatmul.bf16.gmra.mxu0 %v785
        %v802 = vpop.f32.mrf.mxu0
        %v803 = vadd.f32 0.0, %v802
        %v804 = vpop.f32.mrf.mxu0
        %805 = vdwg.mxu0
        %806 = vmatpush.bf16.msra.mxu0 0
        %807 = vmatpush.bf16.msra.mxu0 0
        %808 = vmatpush.bf16.msra.mxu0 0
        %809 = vmatpush.bf16.msra.mxu0 %v791
        %810 = vmatpush.bf16.msra.mxu0 %v781
        %811 = vmatpush.bf16.msra.mxu0 %v779
        %812 = vmatpush.bf16.msra.mxu0 %v777
        %813 = vmatpush.bf16.msra.mxu0 %v775
        %814 = vmatmul.bf16.gmra.mxu0 %v785
        %v815 = vpop.f32.mrf.mxu0
        %v816 = vadd.f32 0.0, %v815
        %v817 = vpop.f32.mrf.mxu0
        %818 = vdwg.mxu0
        %820 = vset.pattern.permute.xlu0 0
        %821 = vperm.xlu0 %820, %v709
        %v822 = vpop.permute.xlu0 %821
        %v824 = vmul.f32 %v803, %v822
        %v825 = vmul.f32 %v816, %v822
        %826 = vset.pattern.permute.xlu0 1
        %827 = vperm.xlu0 %826, %v709
        %v828 = vpop.permute.xlu0 %827
        %v830 = vadd.f32 %v824, %v828
        %v831 = vadd.f32 %v825, %v828
        %v832 = vsub.f32 0.0, %v830
        %v833 = vsub.f32 0.0, %v831
        %v834 = vmul.f32 %v832, 1.442695
        %v835 = vpow.pop %v834
        %v836 = vmul.f32 %v833, 1.442695
        %v837 = vpow.pop %v836
        %v838 = vadd.f32 %v835, 1.0
        %v839 = vadd.f32 %v837, 1.0
        %v840 = vrcp.pop %v838
        %v841 = vrcp.pop %v839
        %v842 = vmul.f32 %v830, %v840
        %v843 = vmul.f32 %v831, %v841
        %v844 = vadd.f32 %v501, %v842
        %v845 = vadd.f32 %v502, %v843
        %v846 = vld [vmem:[%s7] sm:$0xf]
        %v847 = vld [vmem:[%s7 + $0x4] sm:$0xf]
        %v848 = vpack.c.bf16 %v844, %v844
        %v849 = vpack.c.bf16 %v845, %v845
        %v850 = vld [vmem:[%s8] sm:$0xf]
        %v851 = vld [vmem:[%s8 + $0x4] sm:$0xf]
        %v852 = vpack.c.bf16 %v503, %v503
        %v853 = vpack.c.bf16 %v504, %v504
        %v856 = vunpack.c.l.b16 %v850
        %v857 = vunpack.c.l.b16 %v851
        %v858 = vpack.c.b16 %v857, %v856
        %vm859 = vcmask 64512
        %v861 = vsel %vm859, %v858, 0
        %v864 = vsel %vm650, %v852, 0
        %v867 = vsel %vm650, %v853, 0
        %869 = vmatpush.bf16.msra.mxu0 0
        %870 = vmatpush.bf16.msra.mxu0 0
        %871 = vmatpush.bf16.msra.mxu0 0
        %872 = vmatpush.bf16.msra.mxu0 0
        %873 = vmatpush.bf16.msra.mxu0 0
        %874 = vmatpush.bf16.msra.mxu0 0
        %875 = vmatpush.bf16.msra.mxu0 0
        %876 = vmatpush.bf16.msra.mxu0 %v864
        %877 = vmatmul.bf16.gmra.mxu0 %v861
        %v878 = vpop.f32.mrf.mxu0
        %v879 = vadd.f32 0.0, %v878
        %v880 = vpop.f32.mrf.mxu0
        %v881 = vadd.f32 0.0, %v880
        %882 = vdwg.mxu0
        %883 = vmatpush.bf16.msra.mxu0 0
        %884 = vmatpush.bf16.msra.mxu0 0
        %885 = vmatpush.bf16.msra.mxu0 0
        %886 = vmatpush.bf16.msra.mxu0 0
        %887 = vmatpush.bf16.msra.mxu0 0
        %888 = vmatpush.bf16.msra.mxu0 0
        %889 = vmatpush.bf16.msra.mxu0 0
        %890 = vmatpush.bf16.msra.mxu0 %v867
        %891 = vmatmul.bf16.gmra.mxu0 %v861
        %v892 = vpop.f32.mrf.mxu0
        %v893 = vadd.f32 0.0, %v892
        %v894 = vpop.f32.mrf.mxu0
        %v895 = vadd.f32 0.0, %v894
        %896 = vdwg.mxu0
        %v899 = vunpack.c.l.b16 %v846
        %v900 = vunpack.c.l.b16 %v847
        %v901 = vpack.c.b16 %v900, %v899
        %v903 = vsel %vm859, %v901, 0
        %v906 = vsel %vm650, %v848, 0
        %v909 = vsel %vm650, %v849, 0
        %911 = vmatpush.bf16.msra.mxu0 0
        %912 = vmatpush.bf16.msra.mxu0 0
        %913 = vmatpush.bf16.msra.mxu0 0
        %914 = vmatpush.bf16.msra.mxu0 0
        %915 = vmatpush.bf16.msra.mxu0 0
        %916 = vmatpush.bf16.msra.mxu0 0
        %917 = vmatpush.bf16.msra.mxu0 0
        %918 = vmatpush.bf16.msra.mxu0 %v906
        %919 = vmatmul.bf16.gmra.mxu0 %v903
        %v920 = vpop.f32.mrf.mxu0
        %v921 = vadd.f32 %v879, %v920
        %v922 = vpop.f32.mrf.mxu0
        %v923 = vadd.f32 %v881, %v922
        %924 = vdwg.mxu0
        %925 = vmatpush.bf16.msra.mxu0 0
        %926 = vmatpush.bf16.msra.mxu0 0
        %927 = vmatpush.bf16.msra.mxu0 0
        %928 = vmatpush.bf16.msra.mxu0 0
        %929 = vmatpush.bf16.msra.mxu0 0
        %930 = vmatpush.bf16.msra.mxu0 0
        %931 = vmatpush.bf16.msra.mxu0 0
        %932 = vmatpush.bf16.msra.mxu0 %v909
        %933 = vmatmul.bf16.gmra.mxu0 %v903
        %v934 = vpop.f32.mrf.mxu0
        %v935 = vadd.f32 %v893, %v934
        %v936 = vpop.f32.mrf.mxu0
        %v937 = vadd.f32 %v895, %v936
        %938 = vdwg.mxu0
        %v939 = vld [vmem:[%s9] sm:$0xff]
        %v940 = vld [vmem:[%s9 + $0x8] sm:$0xff]
        %942 = vset.pattern.permute.xlu0 0
        %943 = vperm.xlu0 %942, %v939
        %v944 = vpop.permute.xlu0 %943
        %947 = vset.pattern.permute.xlu0 0
        %948 = vperm.xlu0 %947, %v940
        %v949 = vpop.permute.xlu0 %948
        %v951 = vmul.f32 %v921, %v944
        %v952 = vmul.f32 %v935, %v944
        %v953 = vmul.f32 %v923, %v949
        %v954 = vmul.f32 %v937, %v949
        %955 = vset.pattern.permute.xlu0 1
        %956 = vperm.xlu0 %955, %v939
        %v957 = vpop.permute.xlu0 %956
        %959 = vset.pattern.permute.xlu0 1
        %960 = vperm.xlu0 %959, %v940
        %v961 = vpop.permute.xlu0 %960
        %v963 = vadd.f32 %v951, %v957
        %v964 = vadd.f32 %v952, %v957
        %v965 = vadd.f32 %v953, %v961
        %v966 = vadd.f32 %v954, %v961
        %v967 = vsub.f32 0.0, %v963
        %v968 = vsub.f32 0.0, %v964
        %v969 = vsub.f32 0.0, %v965
        %v970 = vsub.f32 0.0, %v966
        %v971 = vmul.f32 %v967, 1.442695
        %v972 = vpow.pop %v971
        %v973 = vmul.f32 %v968, 1.442695
        %v974 = vpow.pop %v973
        %v975 = vmul.f32 %v969, 1.442695
        %v976 = vpow.pop %v975
        %v977 = vmul.f32 %v970, 1.442695
        %v978 = vpow.pop %v977
        %v979 = vadd.f32 %v972, 1.0
        %v980 = vadd.f32 %v974, 1.0
        %v981 = vadd.f32 %v976, 1.0
        %v982 = vadd.f32 %v978, 1.0
        %v983 = vrcp.pop %v979
        %v984 = vrcp.pop %v980
        %v985 = vrcp.pop %v981
        %v986 = vrcp.pop %v982
        %v987 = vmul.f32 %v963, %v983
        %v988 = vmul.f32 %v964, %v984
        %v989 = vmul.f32 %v965, %v985
        %v990 = vmul.f32 %v966, %v986
        %991 = vst [vmem:[%s406] sm:$0xff] %v987
        %992 = vst [vmem:[%s406 + $0x8] sm:$0xff] %v988
        %993 = vst [vmem:[%s406 + $0x10] sm:$0xff] %v989
        %994 = vst [vmem:[%s406 + $0x18] sm:$0xff] %v990
        %s995 = sand.u32 %s272, 1
        %s996 = scalar_lea.sflag [#allocation4], %s995
        %s997 = sand.u32 %s272, 1
        %s998 = smul.addr %s997, 32
        %s999 = scalar_lea.vmem [#allocation5], %s998
        // Predicated region
        $region69: #{tpu_custom_call.1} parent=63 // pred_check
          %p1000 = pneg %p282
        $region70: #{tpu_custom_call.1} parent=63 // pred_check_branch
          %1002 = sbr.rel (%p1000) target = $region72
        $region71: #{tpu_custom_call.1} parent=63 // pred_region
          %1004 = vsyncadd %s996, 0
          %s1005 = smul.addr %s28, 4
          %s1006 = smul.addr %s1005, 8
          %s1007 = scalar_lea.hbm %s11, %s1006
          %s1008 = sshll.u32 %s999, 4
          %s1009 = int_to_ptr.vmem [resolvable:$true] %s1008
          %s1010 = sshll.u32 %s1007, 4
          %s1011 = int_to_ptr.hbm [resolvable:$true] %s1010
          %1016 = dma.vmem_to_hbm [thread:$0]  %s1009, 512, %s1011, %s996, 256, 256, 16
        $region72: #{tpu_custom_call.1} parent=63 // pred_fallthru
          _
      $region64: #{tpu_custom_call.1} parent=5 // pred_fallthru
        _
      %p1017 = scmp.le.s32.totalorder 2, %s23
      // Predicated region
      $region73: #{tpu_custom_call.1} parent=5 // pred_check
        %p1018 = pneg %p1017
      $region74: #{tpu_custom_call.1} parent=5 // pred_check_branch
        %1020 = sbr.rel (%p1018) target = $region76
      $region75: #{tpu_custom_call.1} parent=5 // pred_region
        %s1021 = ssub.s32 %s23, 2
        // Predicated region
        $region77: #{tpu_custom_call.1} parent=75 // pred_check
          %p1022 = pneg %p288
        $region78: #{tpu_custom_call.1} parent=75 // pred_check_branch
          %1024 = sbr.rel (%p1022) target = $region80
        $region79: #{tpu_custom_call.1} parent=75 // pred_region
          %s1025 = sand.u32 %s273, 1
          %s1026 = scalar_lea.sflag [#allocation4], %s1025
          %s1027 = sand.u32 %s273, 1
          %s1028 = smul.addr %s1027, 32
          %s1029 = scalar_lea.vmem [#allocation5], %s1028
          %1031 = dma.done %s1026, 512
        $region80: #{tpu_custom_call.1} parent=75 // pred_fallthru
          _
      $region76: #{tpu_custom_call.1} parent=5 // pred_fallthru
        _
    $region6: #{tpu_custom_call.1} parent=1 // loop_footer
      %s27 = sadd.s32 1, %s23
    $region7: #{tpu_custom_call.1} parent=1 // loop_footer_branch
      %22 = sbr.rel target = $region3
    $region8: #{tpu_custom_call.1} parent=1 // loop_exit
      _
    %1032 = vsyncpa [#allocation3], 1
    %s1033 = scalar_lea.sflag [#allocation3], 1
    %1034 = vsyncpa %s1033, 1
    %1035 = vsyncpa [#allocation4], 1
    %s1036 = scalar_lea.sflag [#allocation4], 1
    %1037 = vsyncpa %s1036, 1

</llo_original>
